<compile_context>
chip_gen: v7x
topology: tpu7x:2x2x1
jax: 0.10.0
libtpu: 0.0.40
codegen_flags: <defaults>
</compile_context>

<pallas_src>
import functools

import jax
import jax.numpy as jnp
from jax.experimental import pallas as pl
from jax.experimental.pallas import tpu as pltpu


def _round_down(v, m):
    return max(m, (v // m) * m)


# ---------------------------------------------------------------------------
# Fused single-pass kernel: pooling + channel_mul MLP + elementwise scale.
# Block covers the full (C, N) slab of one batch element.
# ---------------------------------------------------------------------------
def _fused_kernel(x_ref, wm_ref, bm_ref, w1_ref, b1_ref, g_ref, be_ref,
                  w2_ref, b2_ref, o_ref, *, eps):
    x = x_ref[0].astype(jnp.float32)                                  # (C, N)

    # conv_mask: 1x1x1 Conv3d(C -> 1) == per-voxel dot over channels (VPU +
    # cross-sublane reduce; MXU stays idle, kernel is mem-bound).
    logits = jnp.sum(wm_ref[...] * x, axis=0, keepdims=True) + bm_ref[...]   # (1, N)

    # Softmax over N and weighted context (whole N is resident -> no online pass).
    m = jnp.max(logits, axis=-1, keepdims=True)
    p = jnp.exp(logits - m)                                           # (1, N)
    l = jnp.sum(p, axis=-1, keepdims=True)                            # (1, 1)
    ctx = jnp.sum(x * p, axis=-1, keepdims=True) / l                  # (C, 1)

    # channel_mul MLP on the (C,) context, entirely on the VPU.
    #   y1 = W1 @ ctx + b1 ; LayerNorm over P ; ReLU ; y2 = W2 @ h + b2
    y1 = jnp.sum(w1_ref[...] * ctx, axis=0, keepdims=True) + b1_ref[...]     # (1, P)
    mu = jnp.mean(y1, axis=-1, keepdims=True)
    var = jnp.mean((y1 - mu) ** 2, axis=-1, keepdims=True)
    h = (y1 - mu) * jax.lax.rsqrt(var + eps) * g_ref[...] + be_ref[...]
    h = jnp.maximum(h, 0.0)                                           # (1, P)
    y2 = jnp.sum(w2_ref[...] * h, axis=-1, keepdims=True) + b2_ref[...]      # (C, 1)

    scale = 1.0 + jax.nn.sigmoid(y2)                                  # (C, 1)
    o_ref[0] = (x * scale).astype(o_ref.dtype)


# ---------------------------------------------------------------------------
# Two-pass fallback, pass 1: attention pooling with online softmax over tiled N.
# ---------------------------------------------------------------------------
def _pool_kernel(x_ref, wm_ref, bm_ref, ctx_ref, m_sc, l_sc, acc_sc,
                 *, tile_n, n_valid):
    n_id = pl.program_id(1)

    @pl.when(n_id == 0)
    def _init():
        m_sc[...] = jnp.full_like(m_sc, -jnp.inf)
        l_sc[...] = jnp.zeros_like(l_sc)
        acc_sc[...] = jnp.zeros_like(acc_sc)

    # Valid-lane mask for the (possibly ragged) last tile.  x is NOT pre-padded,
    # so OOB lanes hold unspecified VMEM data and must be zeroed before use.
    gidx = n_id * tile_n + jax.lax.broadcasted_iota(jnp.int32, (1, tile_n), 1)
    valid = gidx < n_valid                                            # (1, TN)

    x = x_ref[0].astype(jnp.float32)                                  # (C, TN)
    x = jnp.where(valid, x, 0.0)

    logits = jnp.sum(wm_ref[...] * x, axis=0, keepdims=True) + bm_ref[...]   # (1, TN)
    logits = jnp.where(valid, logits, -1e30)

    # Online softmax + weighted-context accumulation.
    m_new = jnp.maximum(m_sc[...], jnp.max(logits, axis=-1, keepdims=True))
    alpha = jnp.exp(m_sc[...] - m_new)
    p = jnp.exp(logits - m_new)                                       # (1, TN)
    l_sc[...] = alpha * l_sc[...] + jnp.sum(p, axis=-1, keepdims=True)
    acc_sc[...] = alpha * acc_sc[...] + jnp.sum(x * p, axis=-1, keepdims=True)
    m_sc[...] = m_new

    @pl.when(n_id == pl.num_programs(1) - 1)
    def _finalize():
        ctx_ref[0] = (acc_sc[...] / l_sc[...]).astype(ctx_ref.dtype)


# ---------------------------------------------------------------------------
# Two-pass fallback, pass 2: lane+sublane-dense elementwise fusion
# out = x * (1 + sigmoid(term)) on the flattened (B*C, N) view.
# ---------------------------------------------------------------------------
def _fuse_kernel(x_ref, s_ref, o_ref):
    o_ref[...] = (x_ref[...] * s_ref[...]).astype(o_ref.dtype)


def context_block3d(x, params, *, tile_target_bytes=1 << 20,
                    fused_slab_limit_bytes=4 << 20, force_two_pass=False):
    B, C, D, H, W = x.shape
    N = D * H * W
    P = params["w1"].shape[0]
    esize = jnp.dtype(x.dtype).itemsize

    x2 = x.reshape(B, C, N)
    wm_col = params["w_mask"].reshape(C, 1).astype(jnp.float32)       # (C, 1)
    bm = params["b_mask"].reshape(1, 1).astype(jnp.float32)           # (1, 1)

    slab_f32_bytes = C * N * 4
    use_fused = (not force_two_pass) and (slab_f32_bytes <= fused_slab_limit_bytes)

    # -------------------- fused single-pass path ---------------------------
    if use_fused:
        w1t = params["w1"].T.astype(jnp.float32)                      # (C, P)
        b1r = params["b1"].reshape(1, P).astype(jnp.float32)
        gr = params["gamma"].reshape(1, P).astype(jnp.float32)
        br = params["beta"].reshape(1, P).astype(jnp.float32)
        w2 = params["w2"].astype(jnp.float32)                         # (C, P)
        b2c = params["b2"].reshape(C, 1).astype(jnp.float32)

        # double-buffered in/out blocks + in-register f32 working copies + margin
        need = 4 * C * N * esize + 3 * slab_f32_bytes + (4 << 20)
        vmem_limit = int(min(max(need, 32 << 20), 48 << 20))

        out = pl.pallas_call(
            functools.partial(_fused_kernel, eps=1e-5),
            out_shape=jax.ShapeDtypeStruct((B, C, N), x.dtype),
            grid_spec=pltpu.PrefetchScalarGridSpec(
                num_scalar_prefetch=0,
                grid=(B,),
                in_specs=[
                    pl.BlockSpec((1, C, N), lambda b: (b, 0, 0)),     # x slab
                    pl.BlockSpec((C, 1), lambda b: (0, 0)),           # conv_mask w
                    pl.BlockSpec((1, 1), lambda b: (0, 0)),           # conv_mask b
                    pl.BlockSpec((C, P), lambda b: (0, 0)),           # w1^T
                    pl.BlockSpec((1, P), lambda b: (0, 0)),           # b1
                    pl.BlockSpec((1, P), lambda b: (0, 0)),           # gamma
                    pl.BlockSpec((1, P), lambda b: (0, 0)),           # beta
                    pl.BlockSpec((C, P), lambda b: (0, 0)),           # w2
                    pl.BlockSpec((C, 1), lambda b: (0, 0)),           # b2
                ],
                out_specs=pl.BlockSpec((1, C, N), lambda b: (b, 0, 0)),
            ),
            compiler_params=pltpu.CompilerParams(
                dimension_semantics=("parallel",),
                vmem_limit_bytes=vmem_limit),
        )(x2, wm_col, bm, w1t, b1r, gr, br, w2, b2c)
        return out.reshape(B, C, D, H, W)

    # -------------------- two-pass fallback ---------------------------------
    # Pass 1: byte-sized tiles over N; no pre-padding (ragged tile masked in-kernel).
    tn = _round_down(tile_target_bytes // max(C * esize, 1), 128)
    if tn >= N:
        tn = N                                                        # full-dim block
    n_tiles = pl.cdiv(N, tn)

    vmem1 = int(min(max(2 * C * tn * esize + 4 * C * tn * 4 + (4 << 20),
                        32 << 20), 48 << 20))

    ctx = pl.pallas_call(
        functools.partial(_pool_kernel, tile_n=tn, n_valid=N),
        out_shape=jax.ShapeDtypeStruct((B, C, 1), jnp.float32),
        grid_spec=pltpu.PrefetchScalarGridSpec(
            num_scalar_prefetch=0,
            grid=(B, n_tiles),
            in_specs=[
                pl.BlockSpec((1, C, tn), lambda b, n: (b, 0, n)),     # x tile
                pl.BlockSpec((C, 1), lambda b, n: (0, 0)),            # conv_mask w
                pl.BlockSpec((1, 1), lambda b, n: (0, 0)),            # conv_mask b
            ],
            out_specs=pl.BlockSpec((1, C, 1), lambda b, n: (b, 0, 0)),
            scratch_shapes=[
                pltpu.VMEM((1, 1), jnp.float32),                      # running max
                pltpu.VMEM((1, 1), jnp.float32),                      # running sum
                pltpu.VMEM((C, 1), jnp.float32),                      # running context
            ],
        ),
        compiler_params=pltpu.CompilerParams(
            dimension_semantics=("parallel", "arbitrary"),
            vmem_limit_bytes=vmem1),
    )(x2, wm_col, bm)

    # channel_mul_conv MLP on the tiny (B, C) context, in plain XLA.
    ctx2 = ctx[:, :, 0]                                               # (B, C)
    y1 = ctx2 @ params["w1"].T + params["b1"][:, 0]                   # (B, P)
    mu = jnp.mean(y1, axis=-1, keepdims=True)
    var = jnp.mean((y1 - mu) ** 2, axis=-1, keepdims=True)
    h = (y1 - mu) * jax.lax.rsqrt(var + 1e-5) * params["gamma"][:, 0] + params["beta"][:, 0]
    h = jnp.maximum(h, 0.0)
    y2 = h @ params["w2"].T + params["b2"][:, 0]                      # (B, C)
    scale = (1.0 + jax.nn.sigmoid(y2)).astype(x.dtype)                # (B, C)

    # Pass 2: flatten (B, C) into the sublane axis for large dense blocks.
    rows = B * C
    x_flat = x2.reshape(rows, N)
    s_flat = scale.reshape(rows, 1)
    R = rows if rows <= 512 else 512                                  # full dim or mult of 8
    tn2 = _round_down((2 * tile_target_bytes) // max(R * esize, 1), 128)
    if tn2 >= N:
        tn2 = N
    grid2 = (pl.cdiv(rows, R), pl.cdiv(N, tn2))
    vmem2 = int(min(max(5 * R * tn2 * max(esize, 4) + (4 << 20), 32 << 20), 48 << 20))

    out_flat = pl.pallas_call(
        _fuse_kernel,
        out_shape=jax.ShapeDtypeStruct((rows, N), x.dtype),
        grid_spec=pltpu.PrefetchScalarGridSpec(
            num_scalar_prefetch=0,
            grid=grid2,
            in_specs=[
                pl.BlockSpec((R, tn2), lambda r, n: (r, n)),          # x tile
                pl.BlockSpec((R, 1), lambda r, n: (r, 0)),            # per-row scale
            ],
            out_specs=pl.BlockSpec((R, tn2), lambda r, n: (r, n)),
        ),
        compiler_params=pltpu.CompilerParams(
            dimension_semantics=("parallel", "parallel"),
            vmem_limit_bytes=vmem2),
    )(x_flat, s_flat)

    return out_flat.reshape(B, C, D, H, W)


def reference(x, params):
    """Pure-JAX reference mirroring the PyTorch forward."""
    B, C, D, H, W = x.shape
    N = D * H * W
    xf = x.reshape(B, C, N)
    logits = jnp.einsum('c,bcn->bn', params['w_mask'][0], xf) + params['b_mask'][0, 0]
    pmask = jax.nn.softmax(logits, axis=-1)
    ctx = jnp.einsum('bcn,bn->bc', xf, pmask)                         # (B, C)
    y1 = ctx @ params['w1'].T + params['b1'][:, 0]                    # (B, P)
    mu = y1.mean(-1, keepdims=True)
    var = ((y1 - mu) ** 2).mean(-1, keepdims=True)
    h = (y1 - mu) / jnp.sqrt(var + 1e-5) * params['gamma'][:, 0] + params['beta'][:, 0]
    h = jnp.maximum(h, 0.0)
    y2 = h @ params['w2'].T + params['b2'][:, 0]                      # (B, C)
    s = jax.nn.sigmoid(y2)
    out = xf * (1.0 + s[:, :, None])
    return out.reshape(B, C, D, H, W)


def init_params(key, inplanes, ratio):
    planes = int(inplanes * ratio)
    ks = jax.random.split(key, 6)
    return {
        "w_mask": 0.1 * jax.random.normal(ks[0], (1, inplanes), jnp.float32),
        "b_mask": 0.1 * jax.random.normal(ks[1], (1, 1), jnp.float32),
        "w1":     0.1 * jax.random.normal(ks[2], (planes, inplanes), jnp.float32),
        "b1":     0.1 * jax.random.normal(ks[3], (planes, 1), jnp.float32),
        "gamma":  jnp.ones((planes, 1), jnp.float32),
        "beta":   jnp.zeros((planes, 1), jnp.float32),
        "w2":     0.1 * jax.random.normal(ks[4], (inplanes, planes), jnp.float32),
        "b2":     0.1 * jax.random.normal(ks[5], (inplanes, 1), jnp.float32),
    }


if __name__ == "__main__":
    # N = D*H*W = 960 (not 128-aligned) -> exercises both the fused full-slab
    # path and (with a forced small tile) the multi-tile online-softmax path
    # with ragged-lane masking and un-padded inputs/outputs.
    B, C, D, H, W = 2, 8, 4, 16, 15
    ratio = 0.5                            # planes = 4

    key = jax.random.PRNGKey(0)
    kx, kp = jax.random.split(key)
    x = jax.random.normal(kx, (B, C, D, H, W), jnp.float32)
    params = init_params(kp, C, ratio)

    ref = jax.block_until_ready(reference(x, params))

    # Fused single-pass path (default for this size).
    out_fused = jax.block_until_ready(context_block3d(x, params))
    assert out_fused.shape == (B, C, D, H, W)
    err_f = jnp.max(jnp.abs(out_fused - ref))
    assert jnp.allclose(out_fused, ref, atol=1e-4, rtol=1e-4), f"fused max err {err_f}"

    # Two-pass tiled path (forced, small tiles -> multi-tile online softmax +
    # ragged last tile with no padding).
    out_tiled = jax.block_until_ready(
        context_block3d(x, params, force_two_pass=True, tile_target_bytes=16 * 1024))
    err_t = jnp.max(jnp.abs(out_tiled - ref))
    assert jnp.allclose(out_tiled, ref, atol=1e-4, rtol=1e-4), f"two-pass max err {err_t}"

    print("KERNEL_OK")
</pallas_src>

<mosaic_0001>
module attributes {stable_mosaic.version = 11 : i64} {
  func.func @_fused_kernel(%arg0: i32, %arg1: memref<1x8x960xf32, #tpu.memory_space<vmem>>, %arg2: memref<8x1xf32, #tpu.memory_space<vmem>>, %arg3: memref<1x1xf32, #tpu.memory_space<vmem>>, %arg4: memref<8x4xf32, #tpu.memory_space<vmem>>, %arg5: memref<1x4xf32, #tpu.memory_space<vmem>>, %arg6: memref<1x4xf32, #tpu.memory_space<vmem>>, %arg7: memref<1x4xf32, #tpu.memory_space<vmem>>, %arg8: memref<8x4xf32, #tpu.memory_space<vmem>>, %arg9: memref<8x1xf32, #tpu.memory_space<vmem>>, %arg10: memref<1x8x960xf32, #tpu.memory_space<vmem>>) attributes {dimension_semantics = [#tpu.dimension_semantics<parallel>], iteration_bounds = array<i64: 2>, scalar_prefetch = 0 : i64, scratch_operands = 0 : i64, tpu.core_type = #tpu.core_type<tc>, window_params = [{transform_indices = @transform_0, window_bounds = array<i64: 1, 8, 960>}, {pipeline_mode = #tpu.pipeline_mode<synchronous>, transform_indices = @transform_1, window_bounds = array<i64: 8, 1>}, {pipeline_mode = #tpu.pipeline_mode<synchronous>, transform_indices = @transform_2, window_bounds = array<i64: 1, 1>}, {pipeline_mode = #tpu.pipeline_mode<synchronous>, transform_indices = @transform_3, window_bounds = array<i64: 8, 4>}, {pipeline_mode = #tpu.pipeline_mode<synchronous>, transform_indices = @transform_4, window_bounds = array<i64: 1, 4>}, {pipeline_mode = #tpu.pipeline_mode<synchronous>, transform_indices = @transform_5, window_bounds = array<i64: 1, 4>}, {pipeline_mode = #tpu.pipeline_mode<synchronous>, transform_indices = @transform_6, window_bounds = array<i64: 1, 4>}, {pipeline_mode = #tpu.pipeline_mode<synchronous>, transform_indices = @transform_7, window_bounds = array<i64: 8, 4>}, {pipeline_mode = #tpu.pipeline_mode<synchronous>, transform_indices = @transform_8, window_bounds = array<i64: 8, 1>}, {transform_indices = @transform_9, window_bounds = array<i64: 1, 8, 960>}]} {
    %c0 = arith.constant 0 : index
    %c0_0 = arith.constant 0 : index
    %c0_1 = arith.constant 0 : index
    %0 = vector.load %arg1[%c0, %c0_0, %c0_1] : memref<1x8x960xf32, #tpu.memory_space<vmem>>, vector<1x8x960xf32>
    %1 = vector.shape_cast %0 : vector<1x8x960xf32> to vector<8x960xf32>
    %c0_2 = arith.constant 0 : index
    %c0_3 = arith.constant 0 : index
    %2 = vector.load %arg2[%c0_2, %c0_3] : memref<8x1xf32, #tpu.memory_space<vmem>>, vector<8x1xf32>
    %3 = vector.broadcast %2 : vector<8x1xf32> to vector<8x960xf32>
    %4 = arith.mulf %3, %1 : vector<8x960xf32>
    %cst = arith.constant dense<0.000000e+00> : vector<960xf32>
    %5 = vector.multi_reduction <add>, %4, %cst [0] : vector<8x960xf32> to vector<960xf32>
    %6 = vector.shape_cast %5 : vector<960xf32> to vector<1x960xf32>
    %c0_4 = arith.constant 0 : index
    %c0_5 = arith.constant 0 : index
    %7 = vector.load %arg3[%c0_4, %c0_5] : memref<1x1xf32, #tpu.memory_space<vmem>>, vector<1x1xf32>
    %8 = vector.broadcast %7 : vector<1x1xf32> to vector<1x960xf32>
    %9 = arith.addf %6, %8 : vector<1x960xf32>
    %cst_6 = arith.constant dense<0xFF800000> : vector<1xf32>
    %10 = vector.multi_reduction <maximumf>, %9, %cst_6 [1] : vector<1x960xf32> to vector<1xf32>
    %11 = vector.shape_cast %10 : vector<1xf32> to vector<1x1xf32>
    %12 = vector.broadcast %11 : vector<1x1xf32> to vector<1x960xf32>
    %13 = arith.subf %9, %12 : vector<1x960xf32>
    %14 = math.exp %13 : vector<1x960xf32>
    %cst_7 = arith.constant dense<0.000000e+00> : vector<1xf32>
    %15 = vector.multi_reduction <add>, %14, %cst_7 [1] : vector<1x960xf32> to vector<1xf32>
    %16 = vector.shape_cast %15 : vector<1xf32> to vector<1x1xf32>
    %17 = vector.broadcast %14 : vector<1x960xf32> to vector<8x960xf32>
    %18 = arith.mulf %1, %17 : vector<8x960xf32>
    %cst_8 = arith.constant dense<0.000000e+00> : vector<8xf32>
    %19 = vector.multi_reduction <add>, %18, %cst_8 [1] : vector<8x960xf32> to vector<8xf32>
    %20 = vector.shape_cast %19 : vector<8xf32> to vector<8x1xf32>
    %21 = vector.broadcast %16 : vector<1x1xf32> to vector<8x1xf32>
    %22 = arith.divf %20, %21 : vector<8x1xf32>
    %c0_9 = arith.constant 0 : index
    %c0_10 = arith.constant 0 : index
    %23 = vector.load %arg4[%c0_9, %c0_10] : memref<8x4xf32, #tpu.memory_space<vmem>>, vector<8x4xf32>
    %24 = vector.broadcast %22 : vector<8x1xf32> to vector<8x4xf32>
    %25 = arith.mulf %23, %24 : vector<8x4xf32>
    %cst_11 = arith.constant dense<0.000000e+00> : vector<4xf32>
    %26 = vector.multi_reduction <add>, %25, %cst_11 [0] : vector<8x4xf32> to vector<4xf32>
    %27 = vector.shape_cast %26 : vector<4xf32> to vector<1x4xf32>
    %c0_12 = arith.constant 0 : index
    %c0_13 = arith.constant 0 : index
    %28 = vector.load %arg5[%c0_12, %c0_13] : memref<1x4xf32, #tpu.memory_space<vmem>>, vector<1x4xf32>
    %29 = arith.addf %27, %28 : vector<1x4xf32>
    %cst_14 = arith.constant dense<0.000000e+00> : vector<1xf32>
    %30 = vector.multi_reduction <add>, %29, %cst_14 [1] : vector<1x4xf32> to vector<1xf32>
    %31 = vector.shape_cast %30 : vector<1xf32> to vector<1x1xf32>
    %cst_15 = arith.constant 4.000000e+00 : f32
    %32 = vector.broadcast %cst_15 : f32 to vector<1x1xf32>
    %33 = arith.divf %31, %32 : vector<1x1xf32>
    %34 = vector.broadcast %33 : vector<1x1xf32> to vector<1x4xf32>
    %35 = arith.subf %29, %34 : vector<1x4xf32>
    %36 = arith.mulf %35, %35 : vector<1x4xf32>
    %cst_16 = arith.constant dense<0.000000e+00> : vector<1xf32>
    %37 = vector.multi_reduction <add>, %36, %cst_16 [1] : vector<1x4xf32> to vector<1xf32>
    %38 = vector.shape_cast %37 : vector<1xf32> to vector<1x1xf32>
    %cst_17 = arith.constant 4.000000e+00 : f32
    %39 = vector.broadcast %cst_17 : f32 to vector<1x1xf32>
    %40 = arith.divf %38, %39 : vector<1x1xf32>
    %41 = vector.broadcast %33 : vector<1x1xf32> to vector<1x4xf32>
    %42 = arith.subf %29, %41 : vector<1x4xf32>
    %cst_18 = arith.constant 9.99999974E-6 : f32
    %43 = vector.broadcast %cst_18 : f32 to vector<1x1xf32>
    %44 = arith.addf %40, %43 : vector<1x1xf32>
    %45 = math.rsqrt %44 : vector<1x1xf32>
    %46 = vector.broadcast %45 : vector<1x1xf32> to vector<1x4xf32>
    %47 = arith.mulf %42, %46 : vector<1x4xf32>
    %c0_19 = arith.constant 0 : index
    %c0_20 = arith.constant 0 : index
    %48 = vector.load %arg6[%c0_19, %c0_20] : memref<1x4xf32, #tpu.memory_space<vmem>>, vector<1x4xf32>
    %49 = arith.mulf %47, %48 : vector<1x4xf32>
    %c0_21 = arith.constant 0 : index
    %c0_22 = arith.constant 0 : index
    %50 = vector.load %arg7[%c0_21, %c0_22] : memref<1x4xf32, #tpu.memory_space<vmem>>, vector<1x4xf32>
    %51 = arith.addf %49, %50 : vector<1x4xf32>
    %cst_23 = arith.constant 0.000000e+00 : f32
    %52 = vector.broadcast %cst_23 : f32 to vector<1x4xf32>
    %53 = arith.maximumf %51, %52 : vector<1x4xf32>
    %c0_24 = arith.constant 0 : index
    %c0_25 = arith.constant 0 : index
    %54 = vector.load %arg8[%c0_24, %c0_25] : memref<8x4xf32, #tpu.memory_space<vmem>>, vector<8x4xf32>
    %55 = vector.broadcast %53 : vector<1x4xf32> to vector<8x4xf32>
    %56 = arith.mulf %54, %55 : vector<8x4xf32>
    %cst_26 = arith.constant dense<0.000000e+00> : vector<8xf32>
    %57 = vector.multi_reduction <add>, %56, %cst_26 [1] : vector<8x4xf32> to vector<8xf32>
    %58 = vector.shape_cast %57 : vector<8xf32> to vector<8x1xf32>
    %c0_27 = arith.constant 0 : index
    %c0_28 = arith.constant 0 : index
    %59 = vector.load %arg9[%c0_27, %c0_28] : memref<8x1xf32, #tpu.memory_space<vmem>>, vector<8x1xf32>
    %60 = arith.addf %58, %59 : vector<8x1xf32>
    %61 = arith.negf %60 : vector<8x1xf32>
    %62 = math.exp %61 : vector<8x1xf32>
    %cst_29 = arith.constant 1.000000e+00 : f32
    %63 = vector.broadcast %cst_29 : f32 to vector<8x1xf32>
    %64 = arith.addf %63, %62 : vector<8x1xf32>
    %65 = arith.divf %63, %64 : vector<8x1xf32>
    %cst_30 = arith.constant 1.000000e+00 : f32
    %66 = vector.broadcast %cst_30 : f32 to vector<8x1xf32>
    %67 = arith.addf %66, %65 : vector<8x1xf32>
    %68 = vector.broadcast %67 : vector<8x1xf32> to vector<8x960xf32>
    %69 = arith.mulf %1, %68 : vector<8x960xf32>
    %c0_31 = arith.constant 0 : index
    %c0_32 = arith.constant 0 : index
    %c0_33 = arith.constant 0 : index
    %70 = vector.load %arg10[%c0_31, %c0_32, %c0_33] : memref<1x8x960xf32, #tpu.memory_space<vmem>>, vector<1x8x960xf32>
    %71 = vector.shape_cast %70 : vector<1x8x960xf32> to vector<8x960xf32>
    %72 = vector.shape_cast %69 : vector<8x960xf32> to vector<1x8x960xf32>
    tpu.vector_store %arg10[%c0_31, %c0_32, %c0_33], %72 {strides = array<i32>} : memref<1x8x960xf32, #tpu.memory_space<vmem>>, vector<1x8x960xf32>,
    return
  }
  func.func @transform_0(%arg0: i32) -> (i32, i32, i32) {
    %c0_i32 = arith.constant 0 : i32
    %c0_i32_0 = arith.constant 0 : i32
    %c0_i32_1 = arith.constant 0 : i32
    return %arg0, %c0_i32, %c0_i32_0 : i32, i32, i32
  }
  func.func @transform_1(%arg0: i32) -> (i32, i32) {
    %c0_i32 = arith.constant 0 : i32
    %c0_i32_0 = arith.constant 0 : i32
    %c0_i32_1 = arith.constant 0 : i32
    return %c0_i32, %c0_i32_0 : i32, i32
  }
  func.func @transform_2(%arg0: i32) -> (i32, i32) {
    %c0_i32 = arith.constant 0 : i32
    %c0_i32_0 = arith.constant 0 : i32
    %c0_i32_1 = arith.constant 0 : i32
    return %c0_i32, %c0_i32_0 : i32, i32
  }
  func.func @transform_3(%arg0: i32) -> (i32, i32) {
    %c0_i32 = arith.constant 0 : i32
    %c0_i32_0 = arith.constant 0 : i32
    %c0_i32_1 = arith.constant 0 : i32
    return %c0_i32, %c0_i32_0 : i32, i32
  }
  func.func @transform_4(%arg0: i32) -> (i32, i32) {
    %c0_i32 = arith.constant 0 : i32
    %c0_i32_0 = arith.constant 0 : i32
    %c0_i32_1 = arith.constant 0 : i32
    return %c0_i32, %c0_i32_0 : i32, i32
  }
  func.func @transform_5(%arg0: i32) -> (i32, i32) {
    %c0_i32 = arith.constant 0 : i32
    %c0_i32_0 = arith.constant 0 : i32
    %c0_i32_1 = arith.constant 0 : i32
    return %c0_i32, %c0_i32_0 : i32, i32
  }
  func.func @transform_6(%arg0: i32) -> (i32, i32) {
    %c0_i32 = arith.constant 0 : i32
    %c0_i32_0 = arith.constant 0 : i32
    %c0_i32_1 = arith.constant 0 : i32
    return %c0_i32, %c0_i32_0 : i32, i32
  }
  func.func @transform_7(%arg0: i32) -> (i32, i32) {
    %c0_i32 = arith.constant 0 : i32
    %c0_i32_0 = arith.constant 0 : i32
    %c0_i32_1 = arith.constant 0 : i32
    return %c0_i32, %c0_i32_0 : i32, i32
  }
  func.func @transform_8(%arg0: i32) -> (i32, i32) {
    %c0_i32 = arith.constant 0 : i32
    %c0_i32_0 = arith.constant 0 : i32
    %c0_i32_1 = arith.constant 0 : i32
    return %c0_i32, %c0_i32_0 : i32, i32
  }
  func.func @transform_9(%arg0: i32) -> (i32, i32, i32) {
    %c0_i32 = arith.constant 0 : i32
    %c0_i32_0 = arith.constant 0 : i32
    %c0_i32_1 = arith.constant 0 : i32
    return %arg0, %c0_i32, %c0_i32_0 : i32, i32, i32
  }
}

</mosaic_0001>

<llo_original>
// kernel: tpu_custom_call.1
$region0: #{tpu_custom_call.1}
  #allocation0 [shape = 'u32[]', space=smem, size = 0x4, offset = 0x4, fixed_abs, tag = 'smem constant byte address 0x4 - core index']
  #allocation1 [shape = 'u32[144,128]{1,0:T(1,128)}', space=vmem, size = 0x12000, scoped, tag = 'internal scratch']
  #allocation2 [shape = 'f32[1,1]{1,0:T(1,128)S(1)}', space=vmem, size = 0x200, scoped, tag = 'scoped memory for tpu_custom_call.1']
  %s0 = inlined_call_operand.hbm [shape: f32[2,8,960], index: 0, kind: input, shape index: {}]
  %s1 = inlined_call_operand.vmem [shape: f32[8,1], index: 1, kind: input, shape index: {}]
  %s2 = inlined_call_operand.<no memory space> [shape: f32[1,1], index: 2, kind: input, shape index: {}]
  %s3 = inlined_call_operand.vmem [shape: f32[8,4], index: 3, kind: input, shape index: {}]
  %s4 = inlined_call_operand.vmem [shape: f32[1,4], index: 4, kind: input, shape index: {}]
  %s5 = inlined_call_operand.vmem [shape: f32[1,4], index: 5, kind: input, shape index: {}]
  %s6 = inlined_call_operand.vmem [shape: f32[1,4], index: 6, kind: input, shape index: {}]
  %s7 = inlined_call_operand.vmem [shape: f32[8,4], index: 7, kind: input, shape index: {}]
  %s8 = inlined_call_operand.vmem [shape: f32[8,1], index: 8, kind: input, shape index: {}]
  %s9 = inlined_call_operand.hbm [shape: f32[2,8,960], index: 9, kind: output, shape index: {}]
  %s10 = sld [smem:[#allocation0]]
  $region73: #{tpu_custom_call.1} parent=0
    _
  %s12 = ssub.s32 1, %s10
  %s13 = scalar_select 0, %s12, %s10
  %v14 = vstv %s2
  %15 = vst [vmem:[#allocation2] sm:$0x1] %v14
  $region1: #{tpu_custom_call.1} parent=0
    #allocation3 [shape = 'u8[65536]{0}', space=vmem, size = 0x10000, scoped, tag = 'input window, operand 0']
    #allocation4 [shape = 's32[2]{0}', space=sflag, size = 0x8, scoped, tag = 'scoped memory for tpu_custom_call.1']
    #allocation5 [shape = 's32[2]{0}', space=sflag, size = 0x8, scoped, tag = 'scoped memory for tpu_custom_call.1']
    #allocation6 [shape = 'u8[65536]{0}', space=vmem, size = 0x10000, scoped, tag = 'output window, operand 0']
    %16 = vsyncpa [#allocation4], 0
    %s17 = scalar_lea.sflag [#allocation4], 1
    %18 = vsyncpa %s17, 0
    %19 = vsyncpa [#allocation5], 0
    %s20 = scalar_lea.sflag [#allocation5], 1
    %21 = vsyncpa %s20, 0
    loop: start=0, step=1, limit=4
    $region2: #{tpu_custom_call.1} parent=1 // loop_pre_header
      _
    $region3: #{tpu_custom_call.1} parent=1 // loop_header
      %s23 = sphi 0, %s27
      %p24 = scmp.ge.s32.totalorder %s23, 4
      %s33 = sphi 0, %s35
      %s36 = sphi 0, %s33
      %s37 = sphi 0, %s36
      %s53 = sphi 0, %s37
      %s57 = sphi 0, %s57
      %s59 = sphi 0, %s57
      %s60 = sphi 0, %s59
      %s74 = sphi 0, %s60
      %s78 = sphi 0, %s78
      %s80 = sphi 0, %s78
      %s81 = sphi 0, %s80
      %s95 = sphi 0, %s81
      %s99 = sphi 0, %s99
      %s101 = sphi 0, %s99
      %s102 = sphi 0, %s101
      %s116 = sphi 0, %s102
      %s120 = sphi 0, %s120
      %s122 = sphi 0, %s120
      %s123 = sphi 0, %s122
      %s137 = sphi 0, %s123
      %s141 = sphi 0, %s141
      %s143 = sphi 0, %s141
      %s144 = sphi 0, %s143
      %s158 = sphi 0, %s144
      %s162 = sphi 0, %s162
      %s164 = sphi 0, %s162
      %s165 = sphi 0, %s164
      %s179 = sphi 0, %s165
      %s183 = sphi 0, %s183
      %s185 = sphi 0, %s183
      %s186 = sphi 0, %s185
      %s200 = sphi 0, %s186
      %s204 = sphi 0, %s204
      %s206 = sphi 0, %s204
      %s207 = sphi 0, %s206
      %s221 = sphi 0, %s207
      %s227 = sphi 0, %s229
      %s230 = sphi 0, %s227
      %s231 = sphi 0, %s230
      %s247 = sphi 0, %s231
    $region4: #{tpu_custom_call.1} parent=1 // loop_header_branch
      %26 = sbr.rel (%p24) target = $region8
    $region5: #{tpu_custom_call.1} parent=1 // loop_body
      %s28 = ssub.s32 %s23, 1
      %s29 = ssub.s32 %s23, 2
      %s30 = sadd.s32 %s23, 1
      %s31 = ssub.s32 %s23, %s30
      %p32 = scmp.eq.s32.totalorder %s31, 0
      %s34 = sadd.s32 %s33, 1
      %s35 = scalar_select %p32, %s33, %s34
      %p38 = pneg %p32
      %p39 = scmp.eq.s32.totalorder %s23, 1
      %p40 = por %p38, %p39
      %p41 = scmp.ne.s32.totalorder %s33, %s36
      %p42 = scmp.eq.s32.totalorder %s23, 0
      %p43 = por %p41, %p42
      %p44 = scmp.ne.s32.totalorder %s33, %s36
      %p45 = scmp.eq.s32.totalorder %s28, 1
      %p46 = por %p44, %p45
      %p47 = scmp.ne.s32.totalorder %s36, %s37
      %p48 = scmp.eq.s32.totalorder %s28, 0
      %p49 = por %p47, %p48
      %p50 = scmp.ne.s32.totalorder %s36, %s37
      %p51 = scmp.eq.s32.totalorder %s29, 1
      %p52 = por %p50, %p51
      %p54 = scmp.ne.s32.totalorder %s37, %s53
      %p55 = scmp.eq.s32.totalorder %s29, 0
      %p56 = por %p54, %p55
      %s58 = sadd.s32 %s57, 1
      %p61 = scmp.eq.s32.totalorder %s23, 1
      %p62 = scmp.ne.s32.totalorder %s57, %s59
      %p63 = scmp.eq.s32.totalorder %s23, 0
      %p64 = por %p62, %p63
      %p65 = scmp.ne.s32.totalorder %s57, %s59
      %p66 = scmp.eq.s32.totalorder %s28, 1
      %p67 = por %p65, %p66
      %p68 = scmp.ne.s32.totalorder %s59, %s60
      %p69 = scmp.eq.s32.totalorder %s28, 0
      %p70 = por %p68, %p69
      %p71 = scmp.ne.s32.totalorder %s59, %s60
      %p72 = scmp.eq.s32.totalorder %s29, 1
      %p73 = por %p71, %p72
      %p75 = scmp.ne.s32.totalorder %s60, %s74
      %p76 = scmp.eq.s32.totalorder %s29, 0
      %p77 = por %p75, %p76
      %s79 = sadd.s32 %s78, 1
      %p82 = scmp.eq.s32.totalorder %s23, 1
      %p83 = scmp.ne.s32.totalorder %s78, %s80
      %p84 = scmp.eq.s32.totalorder %s23, 0
      %p85 = por %p83, %p84
      %p86 = scmp.ne.s32.totalorder %s78, %s80
      %p87 = scmp.eq.s32.totalorder %s28, 1
      %p88 = por %p86, %p87
      %p89 = scmp.ne.s32.totalorder %s80, %s81
      %p90 = scmp.eq.s32.totalorder %s28, 0
      %p91 = por %p89, %p90
      %p92 = scmp.ne.s32.totalorder %s80, %s81
      %p93 = scmp.eq.s32.totalorder %s29, 1
      %p94 = por %p92, %p93
      %p96 = scmp.ne.s32.totalorder %s81, %s95
      %p97 = scmp.eq.s32.totalorder %s29, 0
      %p98 = por %p96, %p97
      %s100 = sadd.s32 %s99, 1
      %p103 = scmp.eq.s32.totalorder %s23, 1
      %p104 = scmp.ne.s32.totalorder %s99, %s101
      %p105 = scmp.eq.s32.totalorder %s23, 0
      %p106 = por %p104, %p105
      %p107 = scmp.ne.s32.totalorder %s99, %s101
      %p108 = scmp.eq.s32.totalorder %s28, 1
      %p109 = por %p107, %p108
      %p110 = scmp.ne.s32.totalorder %s101, %s102
      %p111 = scmp.eq.s32.totalorder %s28, 0
      %p112 = por %p110, %p111
      %p113 = scmp.ne.s32.totalorder %s101, %s102
      %p114 = scmp.eq.s32.totalorder %s29, 1
      %p115 = por %p113, %p114
      %p117 = scmp.ne.s32.totalorder %s102, %s116
      %p118 = scmp.eq.s32.totalorder %s29, 0
      %p119 = por %p117, %p118
      %s121 = sadd.s32 %s120, 1
      %p124 = scmp.eq.s32.totalorder %s23, 1
      %p125 = scmp.ne.s32.totalorder %s120, %s122
      %p126 = scmp.eq.s32.totalorder %s23, 0
      %p127 = por %p125, %p126
      %p128 = scmp.ne.s32.totalorder %s120, %s122
      %p129 = scmp.eq.s32.totalorder %s28, 1
      %p130 = por %p128, %p129
      %p131 = scmp.ne.s32.totalorder %s122, %s123
      %p132 = scmp.eq.s32.totalorder %s28, 0
      %p133 = por %p131, %p132
      %p134 = scmp.ne.s32.totalorder %s122, %s123
      %p135 = scmp.eq.s32.totalorder %s29, 1
      %p136 = por %p134, %p135
      %p138 = scmp.ne.s32.totalorder %s123, %s137
      %p139 = scmp.eq.s32.totalorder %s29, 0
      %p140 = por %p138, %p139
      %s142 = sadd.s32 %s141, 1
      %p145 = scmp.eq.s32.totalorder %s23, 1
      %p146 = scmp.ne.s32.totalorder %s141, %s143
      %p147 = scmp.eq.s32.totalorder %s23, 0
      %p148 = por %p146, %p147
      %p149 = scmp.ne.s32.totalorder %s141, %s143
      %p150 = scmp.eq.s32.totalorder %s28, 1
      %p151 = por %p149, %p150
      %p152 = scmp.ne.s32.totalorder %s143, %s144
      %p153 = scmp.eq.s32.totalorder %s28, 0
      %p154 = por %p152, %p153
      %p155 = scmp.ne.s32.totalorder %s143, %s144
      %p156 = scmp.eq.s32.totalorder %s29, 1
      %p157 = por %p155, %p156
      %p159 = scmp.ne.s32.totalorder %s144, %s158
      %p160 = scmp.eq.s32.totalorder %s29, 0
      %p161 = por %p159, %p160
      %s163 = sadd.s32 %s162, 1
      %p166 = scmp.eq.s32.totalorder %s23, 1
      %p167 = scmp.ne.s32.totalorder %s162, %s164
      %p168 = scmp.eq.s32.totalorder %s23, 0
      %p169 = por %p167, %p168
      %p170 = scmp.ne.s32.totalorder %s162, %s164
      %p171 = scmp.eq.s32.totalorder %s28, 1
      %p172 = por %p170, %p171
      %p173 = scmp.ne.s32.totalorder %s164, %s165
      %p174 = scmp.eq.s32.totalorder %s28, 0
      %p175 = por %p173, %p174
      %p176 = scmp.ne.s32.totalorder %s164, %s165
      %p177 = scmp.eq.s32.totalorder %s29, 1
      %p178 = por %p176, %p177
      %p180 = scmp.ne.s32.totalorder %s165, %s179
      %p181 = scmp.eq.s32.totalorder %s29, 0
      %p182 = por %p180, %p181
      %s184 = sadd.s32 %s183, 1
      %p187 = scmp.eq.s32.totalorder %s23, 1
      %p188 = scmp.ne.s32.totalorder %s183, %s185
      %p189 = scmp.eq.s32.totalorder %s23, 0
      %p190 = por %p188, %p189
      %p191 = scmp.ne.s32.totalorder %s183, %s185
      %p192 = scmp.eq.s32.totalorder %s28, 1
      %p193 = por %p191, %p192
      %p194 = scmp.ne.s32.totalorder %s185, %s186
      %p195 = scmp.eq.s32.totalorder %s28, 0
      %p196 = por %p194, %p195
      %p197 = scmp.ne.s32.totalorder %s185, %s186
      %p198 = scmp.eq.s32.totalorder %s29, 1
      %p199 = por %p197, %p198
      %p201 = scmp.ne.s32.totalorder %s186, %s200
      %p202 = scmp.eq.s32.totalorder %s29, 0
      %p203 = por %p201, %p202
      %s205 = sadd.s32 %s204, 1
      %p208 = scmp.eq.s32.totalorder %s23, 1
      %p209 = scmp.ne.s32.totalorder %s204, %s206
      %p210 = scmp.eq.s32.totalorder %s23, 0
      %p211 = por %p209, %p210
      %p212 = scmp.ne.s32.totalorder %s204, %s206
      %p213 = scmp.eq.s32.totalorder %s28, 1
      %p214 = por %p212, %p213
      %p215 = scmp.ne.s32.totalorder %s206, %s207
      %p216 = scmp.eq.s32.totalorder %s28, 0
      %p217 = por %p215, %p216
      %p218 = scmp.ne.s32.totalorder %s206, %s207
      %p219 = scmp.eq.s32.totalorder %s29, 1
      %p220 = por %p218, %p219
      %p222 = scmp.ne.s32.totalorder %s207, %s221
      %p223 = scmp.eq.s32.totalorder %s29, 0
      %p224 = por %p222, %p223
      %s225 = ssub.s32 %s23, %s30
      %p226 = scmp.eq.s32.totalorder %s225, 0
      %s228 = sadd.s32 %s227, 1
      %s229 = scalar_select %p226, %s227, %s228
      %p232 = pneg %p226
      %p233 = scmp.eq.s32.totalorder %s23, 1
      %p234 = por %p232, %p233
      %p235 = scmp.ne.s32.totalorder %s227, %s230
      %p236 = scmp.eq.s32.totalorder %s23, 0
      %p237 = por %p235, %p236
      %p238 = scmp.ne.s32.totalorder %s227, %s230
      %p239 = scmp.eq.s32.totalorder %s28, 1
      %p240 = por %p238, %p239
      %p241 = scmp.ne.s32.totalorder %s230, %s231
      %p242 = scmp.eq.s32.totalorder %s28, 0
      %p243 = por %p241, %p242
      %p244 = scmp.ne.s32.totalorder %s230, %s231
      %p245 = scmp.eq.s32.totalorder %s29, 1
      %p246 = por %p244, %p245
      %p248 = scmp.ne.s32.totalorder %s231, %s247
      %p249 = scmp.eq.s32.totalorder %s29, 0
      %p250 = por %p248, %p249
      %p251 = scmp.le.s32.totalorder 1, %s23
      %p252 = scmp.lt.s32.totalorder %s23, 3
      %p253 = pnand %p251, %p252
      %p254 = pneg %p253
      // Predicated region
      $region9: #{tpu_custom_call.1} parent=5 // pred_check
        _
      $region10: #{tpu_custom_call.1} parent=5 // pred_check_branch
        %256 = sbr.rel (%p253) target = $region12
      $region11: #{tpu_custom_call.1} parent=5 // pred_region
        %s257 = ssub.s32 %s23, 1
        // Predicated region
        $region13: #{tpu_custom_call.1} parent=11 // pred_check
          %p258 = pneg %p70
        $region14: #{tpu_custom_call.1} parent=11 // pred_check_branch
          %260 = sbr.rel (%p258) target = $region16
        $region15: #{tpu_custom_call.1} parent=11 // pred_region
          _
        $region16: #{tpu_custom_call.1} parent=11 // pred_fallthru
          _
        // Predicated region
        $region17: #{tpu_custom_call.1} parent=11 // pred_check
          %p261 = pneg %p91
        $region18: #{tpu_custom_call.1} parent=11 // pred_check_branch
          %263 = sbr.rel (%p261) target = $region20
        $region19: #{tpu_custom_call.1} parent=11 // pred_region
          _
        $region20: #{tpu_custom_call.1} parent=11 // pred_fallthru
          _
        // Predicated region
        $region21: #{tpu_custom_call.1} parent=11 // pred_check
          %p264 = pneg %p112
        $region22: #{tpu_custom_call.1} parent=11 // pred_check_branch
          %266 = sbr.rel (%p264) target = $region24
        $region23: #{tpu_custom_call.1} parent=11 // pred_region
          _
        $region24: #{tpu_custom_call.1} parent=11 // pred_fallthru
          _
        // Predicated region
        $region25: #{tpu_custom_call.1} parent=11 // pred_check
          %p267 = pneg %p133
        $region26: #{tpu_custom_call.1} parent=11 // pred_check_branch
          %269 = sbr.rel (%p267) target = $region28
        $region27: #{tpu_custom_call.1} parent=11 // pred_region
          _
        $region28: #{tpu_custom_call.1} parent=11 // pred_fallthru
          _
        // Predicated region
        $region29: #{tpu_custom_call.1} parent=11 // pred_check
          %p270 = pneg %p154
        $region30: #{tpu_custom_call.1} parent=11 // pred_check_branch
          %272 = sbr.rel (%p270) target = $region32
        $region31: #{tpu_custom_call.1} parent=11 // pred_region
          _
        $region32: #{tpu_custom_call.1} parent=11 // pred_fallthru
          _
        // Predicated region
        $region33: #{tpu_custom_call.1} parent=11 // pred_check
          %p273 = pneg %p175
        $region34: #{tpu_custom_call.1} parent=11 // pred_check_branch
          %275 = sbr.rel (%p273) target = $region36
        $region35: #{tpu_custom_call.1} parent=11 // pred_region
          _
        $region36: #{tpu_custom_call.1} parent=11 // pred_fallthru
          _
        // Predicated region
        $region37: #{tpu_custom_call.1} parent=11 // pred_check
          %p276 = pneg %p196
        $region38: #{tpu_custom_call.1} parent=11 // pred_check_branch
          %278 = sbr.rel (%p276) target = $region40
        $region39: #{tpu_custom_call.1} parent=11 // pred_region
          _
        $region40: #{tpu_custom_call.1} parent=11 // pred_fallthru
          _
        // Predicated region
        $region41: #{tpu_custom_call.1} parent=11 // pred_check
          %p279 = pneg %p217
        $region42: #{tpu_custom_call.1} parent=11 // pred_check_branch
          %281 = sbr.rel (%p279) target = $region44
        $region43: #{tpu_custom_call.1} parent=11 // pred_region
          _
        $region44: #{tpu_custom_call.1} parent=11 // pred_fallthru
          _
      $region12: #{tpu_custom_call.1} parent=5 // pred_fallthru
        _
      %p282 = scmp.lt.s32.totalorder %s23, 2
      // Predicated region
      $region45: #{tpu_custom_call.1} parent=5 // pred_check
        %p283 = pneg %p282
      $region46: #{tpu_custom_call.1} parent=5 // pred_check_branch
        %285 = sbr.rel (%p283) target = $region48
      $region47: #{tpu_custom_call.1} parent=5 // pred_region
        // Predicated region
        $region49: #{tpu_custom_call.1} parent=47 // pred_check
          %p286 = pneg %p43
        $region50: #{tpu_custom_call.1} parent=47 // pred_check_branch
          %288 = sbr.rel (%p286) target = $region52
        $region51: #{tpu_custom_call.1} parent=47 // pred_region
          %s289 = sand.u32 %s33, 1
          %s290 = scalar_lea.sflag [#allocation4], %s289
          %s291 = sand.u32 %s33, 1
          %s292 = smul.addr %s291, 64
          %s293 = scalar_lea.vmem [#allocation3], %s292
          %s295 = ssub.s32 1024, 1024
          %296 = vsyncadd %s290, %s295
          %s297 = smul.addr %s23, 8
          %s298 = smul.addr %s297, 128
          %s299 = scalar_lea.hbm %s0, %s298
          %s301 = sshll.u32 %s293, 4
          %s302 = int_to_ptr.vmem [resolvable:$true] %s301
          %304 = dma.hbm_to_vmem [thread:$0]  %s299, 1024, %s302, %s290
        $region52: #{tpu_custom_call.1} parent=47 // pred_fallthru
          _
      $region48: #{tpu_custom_call.1} parent=5 // pred_fallthru
        _
      %p305 = scmp.le.s32.totalorder 1, %s23
      %p306 = scmp.lt.s32.totalorder %s23, 3
      %p307 = pnand %p305, %p306
      %p308 = pneg %p307
      // Predicated region
      $region53: #{tpu_custom_call.1} parent=5 // pred_check
        _
      $region54: #{tpu_custom_call.1} parent=5 // pred_check_branch
        %310 = sbr.rel (%p307) target = $region56
      $region55: #{tpu_custom_call.1} parent=5 // pred_region
        %s311 = ssub.s32 %s23, 1
        %s312 = sand.u32 %s36, 1
        %s313 = scalar_lea.sflag [#allocation4], %s312
        %s314 = sand.u32 %s36, 1
        %s315 = smul.addr %s314, 64
        %s316 = scalar_lea.vmem [#allocation3], %s315
        // Predicated region
        $region57: #{tpu_custom_call.1} parent=55 // pred_check
          %p317 = pneg %p49
        $region58: #{tpu_custom_call.1} parent=55 // pred_check_branch
          %319 = sbr.rel (%p317) target = $region60
        $region59: #{tpu_custom_call.1} parent=55 // pred_region
          %320 = dma.done %s313, 1024
        $region60: #{tpu_custom_call.1} parent=55 // pred_fallthru
          _
        %s321 = sand.u32 %s36, 1
        %s322 = scalar_lea.sflag [#allocation4], %s321
        %s323 = sand.u32 %s36, 1
        %s324 = smul.addr %s323, 64
        %s325 = scalar_lea.vmem [#allocation3], %s324
        %p326 = pneg %p49
        %p327 = pneg %p46
        %p328 = pneg %p70
        %p329 = pneg %p67
        %p330 = pneg %p91
        %p331 = pneg %p88
        %p332 = pneg %p112
        %p333 = pneg %p109
        %p334 = pneg %p133
        %p335 = pneg %p130
        %p336 = pneg %p154
        %p337 = pneg %p151
        %p338 = pneg %p175
        %p339 = pneg %p172
        %p340 = pneg %p196
        %p341 = pneg %p193
        %p342 = pneg %p217
        %p343 = pneg %p214
        %p344 = pneg %p243
        %p345 = pneg %p240
        %s346 = sand.u32 %s230, 1
        %s347 = scalar_lea.sflag [#allocation5], %s346
        %s348 = sand.u32 %s230, 1
        %s349 = smul.addr %s348, 64
        %s350 = scalar_lea.vmem [#allocation6], %s349
        %v351 = vld [vmem:[%s316] sm:$0xff]
        %v352 = vld [vmem:[%s316 + $0x8] sm:$0xff]
        %v353 = vld [vmem:[%s316 + $0x10] sm:$0xff]
        %v354 = vld [vmem:[%s316 + $0x18] sm:$0xff]
        %v355 = vld [vmem:[%s316 + $0x20] sm:$0xff]
        %v356 = vld [vmem:[%s316 + $0x28] sm:$0xff]
        %v357 = vld [vmem:[%s316 + $0x30] sm:$0xff]
        %v358 = vld [vmem:[%s316 + $0x38] sm:$0xff]
        %v359 = vld [vmem:[%s1] sm:$0xff]
        %361 = vset.pattern.permute.xlu0 0
        %362 = vperm.xlu0 %361, %v359
        %v363 = vpop.permute.xlu0 %362
        %v365 = vmul.f32 %v363, %v351
        %v366 = vmul.f32 %v363, %v352
        %v367 = vmul.f32 %v363, %v353
        %v368 = vmul.f32 %v363, %v354
        %v369 = vmul.f32 %v363, %v355
        %v370 = vmul.f32 %v363, %v356
        %v371 = vmul.f32 %v363, %v357
        %v372 = vmul.f32 %v363, %v358
        %v373 = vrot.slane %v365, 4
        %v374 = vadd.f32 %v365, %v373
        %v375 = vrot.slane %v374, 2
        %v376 = vadd.f32 %v374, %v375
        %v377 = vrot.slane %v376, 1
        %v378 = vadd.f32 %v376, %v377
        %v379 = vrot.slane %v366, 4
        %v380 = vadd.f32 %v366, %v379
        %v381 = vrot.slane %v380, 2
        %v382 = vadd.f32 %v380, %v381
        %v383 = vrot.slane %v382, 1
        %v384 = vadd.f32 %v382, %v383
        %v385 = vrot.slane %v367, 4
        %v386 = vadd.f32 %v367, %v385
        %v387 = vrot.slane %v386, 2
        %v388 = vadd.f32 %v386, %v387
        %v389 = vrot.slane %v388, 1
        %v390 = vadd.f32 %v388, %v389
        %v391 = vrot.slane %v368, 4
        %v392 = vadd.f32 %v368, %v391
        %v393 = vrot.slane %v392, 2
        %v394 = vadd.f32 %v392, %v393
        %v395 = vrot.slane %v394, 1
        %v396 = vadd.f32 %v394, %v395
        %v397 = vrot.slane %v369, 4
        %v398 = vadd.f32 %v369, %v397
        %v399 = vrot.slane %v398, 2
        %v400 = vadd.f32 %v398, %v399
        %v401 = vrot.slane %v400, 1
        %v402 = vadd.f32 %v400, %v401
        %v403 = vrot.slane %v370, 4
        %v404 = vadd.f32 %v370, %v403
        %v405 = vrot.slane %v404, 2
        %v406 = vadd.f32 %v404, %v405
        %v407 = vrot.slane %v406, 1
        %v408 = vadd.f32 %v406, %v407
        %v409 = vrot.slane %v371, 4
        %v410 = vadd.f32 %v371, %v409
        %v411 = vrot.slane %v410, 2
        %v412 = vadd.f32 %v410, %v411
        %v413 = vrot.slane %v412, 1
        %v414 = vadd.f32 %v412, %v413
        %vm415 = vcmask 523264
        %v416 = vsel %vm415, %v372, 0.0
        %v417 = vrot.slane %v416, 4
        %v418 = vadd.f32 %v416, %v417
        %v419 = vrot.slane %v418, 2
        %v420 = vadd.f32 %v418, %v419
        %v421 = vrot.slane %v420, 1
        %v422 = vadd.f32 %v420, %v421
        %v423 = vld [vmem:[#allocation2] sm:$0x1]
        %425 = vset.pattern.permute.xlu0 0
        %426 = vperm.xlu0 %425, %v423
        %v427 = vpop.permute.xlu0 %426
        %v429 = vlaneseq
        %v430 = vshrl.u32 %v429, 7
        %v431 = vsub.s32 0, %v430
        %v432 = vrot.slane %v427, %v431
        %v433 = vadd.f32 %v378, %v432
        %v434 = vadd.f32 %v384, %v432
        %v435 = vadd.f32 %v390, %v432
        %v436 = vadd.f32 %v396, %v432
        %v437 = vadd.f32 %v402, %v432
        %v438 = vadd.f32 %v408, %v432
        %v439 = vadd.f32 %v414, %v432
        %v440 = vadd.f32 %v422, %v432
        %v441 = vmax.f32 %v433, %v437
        %v442 = vmax.f32 %v434, %v438
        %v443 = vmax.f32 %v435, %v439
        %v444 = vsel %vm415, %v440, -inf
        %v445 = vmax.f32 %v436, %v444
        %v446 = vmax.f32 %v441, %v442
        %v447 = vmax.f32 %v443, %v445
        %v448 = vmax.f32 %v446, %v447
        %449 = vmax.xlane.f32.xlu0 %v448
        %v450 = vpop.xlane.xlu0 %449
        %v451 = vsub.f32 %v433, %v450
        %v452 = vsub.f32 %v434, %v450
        %v453 = vsub.f32 %v435, %v450
        %v454 = vsub.f32 %v436, %v450
        %v455 = vsub.f32 %v437, %v450
        %v456 = vsub.f32 %v438, %v450
        %v457 = vsub.f32 %v439, %v450
        %v458 = vsub.f32 %v440, %v450
        %v459 = vmul.f32 %v451, 1.442695
        %v460 = vpow.pop %v459
        %v461 = vmul.f32 %v452, 1.442695
        %v462 = vpow.pop %v461
        %v463 = vmul.f32 %v453, 1.442695
        %v464 = vpow.pop %v463
        %v465 = vmul.f32 %v454, 1.442695
        %v466 = vpow.pop %v465
        %v467 = vmul.f32 %v455, 1.442695
        %v468 = vpow.pop %v467
        %v469 = vmul.f32 %v456, 1.442695
        %v470 = vpow.pop %v469
        %v471 = vmul.f32 %v457, 1.442695
        %v472 = vpow.pop %v471
        %v473 = vmul.f32 %v458, 1.442695
        %v474 = vpow.pop %v473
        %v475 = vadd.f32 %v460, %v462
        %v476 = vadd.f32 %v475, %v464
        %v477 = vadd.f32 %v476, %v466
        %v478 = vadd.f32 %v477, %v468
        %v479 = vadd.f32 %v478, %v470
        %v480 = vadd.f32 %v479, %v472
        %v481 = vsel %vm415, %v474, 0.0
        %v482 = vadd.f32 %v480, %v481
        %483 = vadd.xlane.f32.xlu0 %v482
        %v484 = vpop.xlane.xlu0 %483
        %v485 = vmul.f32 %v351, %v460
        %v486 = vmul.f32 %v352, %v462
        %v487 = vmul.f32 %v353, %v464
        %v488 = vmul.f32 %v354, %v466
        %v489 = vmul.f32 %v355, %v468
        %v490 = vmul.f32 %v356, %v470
        %v491 = vmul.f32 %v357, %v472
        %v492 = vmul.f32 %v358, %v474
        %v493 = vadd.f32 %v485, %v486
        %v494 = vadd.f32 %v493, %v487
        %v495 = vadd.f32 %v494, %v488
        %v496 = vadd.f32 %v495, %v489
        %v497 = vadd.f32 %v496, %v490
        %v498 = vadd.f32 %v497, %v491
        %v499 = vsel %vm415, %v492, 0.0
        %v500 = vadd.f32 %v498, %v499
        %501 = vadd.xlane.f32.xlu0 %v500
        %v502 = vpop.xlane.xlu0 %501
        %v503 = vrcp.pop %v484
        %v504 = vmul.f32 %v502, %v503
        %v505 = vld [vmem:[%s3] sm:$0xff]
        %v506 = vmul.f32 %v505, %v504
        %vm507 = vcmask 31744
        %v508 = vsel %vm507, %v506, 0.0
        %v509 = vrot.slane %v508, 4
        %v510 = vadd.f32 %v508, %v509
        %v511 = vrot.slane %v510, 2
        %v512 = vadd.f32 %v510, %v511
        %v513 = vrot.slane %v512, 1
        %v514 = vadd.f32 %v512, %v513
        %v515 = vld [vmem:[%s4] sm:$0x1]
        %v516 = vadd.f32 %v514, %v515
        %vm517 = vcmask 24576
        %v518 = vsel %vm517, %v516, 0.0
        %519 = vadd.xlane.f32.xlu0 %v518
        %v520 = vpop.xlane.xlu0 %519
        %v521 = vrcp.pop 4.0
        %v522 = vmul.f32 %v520, %v521
        %v523 = vsub.f32 %v516, %v522
        %v524 = vmul.f32 %v523, %v523
        %v525 = vsel %vm517, %v524, 0.0
        %526 = vadd.xlane.f32.xlu0 %v525
        %v527 = vpop.xlane.xlu0 %526
        %v528 = vmul.f32 %v527, %v521
        %v529 = vadd.f32 %v528, 1e-05
        %v530 = vrsqrt.pop %v529
        %v531 = vmul.f32 %v523, %v530
        %v532 = vld [vmem:[%s5] sm:$0x1]
        %v533 = vmul.f32 %v531, %v532
        %v534 = vld [vmem:[%s6] sm:$0x1]
        %v535 = vadd.f32 %v533, %v534
        %v536 = vmax.f32 %v535, 0.0
        %v537 = vld [vmem:[%s7] sm:$0xff]
        %v538 = vlaneseq
        %v539 = vshrl.u32 %v538, 7
        %v540 = vsub.s32 0, %v539
        %v541 = vrot.slane %v536, %v540
        %v542 = vmul.f32 %v537, %v541
        %v543 = vsel %vm507, %v542, 0.0
        %544 = vadd.xlane.f32.xlu0 %v543
        %v545 = vpop.xlane.xlu0 %544
        %v546 = vld [vmem:[%s8] sm:$0xff]
        %v547 = vadd.f32 %v545, %v546
        %v548 = vxor.u32 %v547, 2147483648
        %v549 = vmul.f32 %v548, 1.442695
        %v550 = vpow.pop %v549
        %v551 = vadd.f32 %v550, 1.0
        %v552 = vrcp.pop %v551
        %v553 = vmul.f32 1.0, %v552
        %v554 = vadd.f32 %v553, 1.0
        %556 = vset.pattern.permute.xlu0 0
        %557 = vperm.xlu0 %556, %v554
        %v558 = vpop.permute.xlu0 %557
        %v560 = vmul.f32 %v351, %v558
        %v561 = vmul.f32 %v352, %v558
        %v562 = vmul.f32 %v353, %v558
        %v563 = vmul.f32 %v354, %v558
        %v564 = vmul.f32 %v355, %v558
        %v565 = vmul.f32 %v356, %v558
        %v566 = vmul.f32 %v357, %v558
        %v567 = vmul.f32 %v358, %v558
        %568 = vst [vmem:[%s350] sm:$0xff] %v560
        %569 = vst [vmem:[%s350 + $0x8] sm:$0xff] %v561
        %570 = vst [vmem:[%s350 + $0x10] sm:$0xff] %v562
        %571 = vst [vmem:[%s350 + $0x18] sm:$0xff] %v563
        %572 = vst [vmem:[%s350 + $0x20] sm:$0xff] %v564
        %573 = vst [vmem:[%s350 + $0x28] sm:$0xff] %v565
        %574 = vst [vmem:[%s350 + $0x30] sm:$0xff] %v566
        %575 = vst.msk [vmem:[%s350 + $0x38] sm:$0xff] %vm415, %v567
        %s576 = sand.u32 %s230, 1
        %s577 = scalar_lea.sflag [#allocation5], %s576
        %s578 = sand.u32 %s230, 1
        %s579 = smul.addr %s578, 64
        %s580 = scalar_lea.vmem [#allocation6], %s579
        // Predicated region
        $region61: #{tpu_custom_call.1} parent=55 // pred_check
          %p581 = pneg %p240
        $region62: #{tpu_custom_call.1} parent=55 // pred_check_branch
          %583 = sbr.rel (%p581) target = $region64
        $region63: #{tpu_custom_call.1} parent=55 // pred_region
          %s585 = ssub.s32 1024, 1024
          %586 = vsyncadd %s577, %s585
          %s587 = smul.addr %s28, 8
          %s588 = smul.addr %s587, 128
          %s589 = scalar_lea.hbm %s9, %s588
          %s591 = sshll.u32 %s580, 4
          %s592 = int_to_ptr.vmem [resolvable:$true] %s591
          %594 = dma.vmem_to_hbm [thread:$0]  %s592, 1024, %s589, %s577
        $region64: #{tpu_custom_call.1} parent=55 // pred_fallthru
          _
      $region56: #{tpu_custom_call.1} parent=5 // pred_fallthru
        _
      %p595 = scmp.le.s32.totalorder 2, %s23
      // Predicated region
      $region65: #{tpu_custom_call.1} parent=5 // pred_check
        %p596 = pneg %p595
      $region66: #{tpu_custom_call.1} parent=5 // pred_check_branch
        %598 = sbr.rel (%p596) target = $region68
      $region67: #{tpu_custom_call.1} parent=5 // pred_region
        %s599 = ssub.s32 %s23, 2
        // Predicated region
        $region69: #{tpu_custom_call.1} parent=67 // pred_check
          %p600 = pneg %p246
        $region70: #{tpu_custom_call.1} parent=67 // pred_check_branch
          %602 = sbr.rel (%p600) target = $region72
        $region71: #{tpu_custom_call.1} parent=67 // pred_region
          %s603 = sand.u32 %s231, 1
          %s604 = scalar_lea.sflag [#allocation5], %s603
          %s605 = sand.u32 %s231, 1
          %s606 = smul.addr %s605, 64
          %s607 = scalar_lea.vmem [#allocation6], %s606
          %608 = dma.done %s604, 1024
        $region72: #{tpu_custom_call.1} parent=67 // pred_fallthru
          _
      $region68: #{tpu_custom_call.1} parent=5 // pred_fallthru
        _
    $region6: #{tpu_custom_call.1} parent=1 // loop_footer
      %s27 = sadd.s32 1, %s23
    $region7: #{tpu_custom_call.1} parent=1 // loop_footer_branch
      %22 = sbr.rel target = $region3
    $region8: #{tpu_custom_call.1} parent=1 // loop_exit
      _
    %609 = vsyncpa [#allocation4], 1
    %s610 = scalar_lea.sflag [#allocation4], 1
    %611 = vsyncpa %s610, 1
    %612 = vsyncpa [#allocation5], 1
    %s613 = scalar_lea.sflag [#allocation5], 1
    %614 = vsyncpa %s613, 1

</llo_original>
